<compile_context>
chip_gen: v7x
topology: tpu7x:2x2x1
jax: 0.10.0
libtpu: 0.0.40
codegen_flags: <defaults>
</compile_context>

<pallas_src>
import functools

import jax
import jax.numpy as jnp
from jax.experimental import pallas as pl
from jax.experimental.pallas import tpu as pltpu


# (in_features, out_features) per layer, matching the PyTorch module.
LAYER_DIMS = [(2, 20), (20, 20), (20, 20), (20, 20),
              (20, 20), (20, 20), (20, 20), (20, 1)]
NUM_LAYERS = len(LAYER_DIMS)
H_PAD = 24          # padded feature width (multiple of 8 sublanes, >= 20)
IN_DIM = 2
OUT_DIM = 1
FC8_ROWS = 8        # visible output rows for the last dot (only row 0 is real)

LANE_TILE_CAP = 8192   # lanes per grid step (multiple of 128)


def _dnn_kernel(x_ref, w_ref, b_ref, o_ref):
    """Fused 8-layer MLP with the batch on the 128-lane axis.

    x_ref: [IN_DIM, tile_n]    f32  input features x batch tile
    w_ref: [8, H_PAD, H_PAD]   f32  zero-padded weights, PyTorch (out, in) layout
    b_ref: [8, H_PAD, 1]       f32  zero-padded biases
    o_ref: [OUT_DIM, tile_n]   f32  output (lane-dense, unmasked stores)

    MXU operands are cast to bf16 (bf16-native MXU on v5e/v6e/v7x) with f32
    accumulation; bias adds and tanh stay in f32.

    NOTE on padding correctness: zero-padded weight rows/cols plus tanh(0) == 0
    keep the padded feature rows exactly zero through every layer.  This
    invariant breaks if the activation is ever changed to one with f(0) != 0.
    """
    x = x_ref[...].astype(jnp.bfloat16)

    # fc1: NO activation.  Only the first IN_DIM columns of w[0] are real.
    w0 = w_ref[0][:, :IN_DIM].astype(jnp.bfloat16)
    h = jnp.dot(w0, x, preferred_element_type=jnp.float32) + b_ref[0]

    # fc2..fc7: tanh (f32).  bf16 operands, f32 accumulation on the MXU.
    for l in range(1, NUM_LAYERS - 1):
        wl = w_ref[l].astype(jnp.bfloat16)
        z = jnp.dot(wl, h.astype(jnp.bfloat16),
                    preferred_element_type=jnp.float32) + b_ref[l]
        h = jnp.tanh(z)

    # fc8: NO activation.  Only row 0 is real -> compute only FC8_ROWS output
    # rows (cuts MXU result pops + bias VALU work on v5e/v6e's sequential MRF).
    w8 = w_ref[NUM_LAYERS - 1][:FC8_ROWS, :].astype(jnp.bfloat16)
    out = (jnp.dot(w8, h.astype(jnp.bfloat16),
                   preferred_element_type=jnp.float32)
           + b_ref[NUM_LAYERS - 1][:FC8_ROWS])

    o_ref[...] = out[:OUT_DIM, :].astype(o_ref.dtype)
    # TODO(synk): dump pl.lower_as_mlir and confirm (a) jnp.tanh lowers to a
    # single EUP op and (b) the (out,in)-layout 24x24 weight tiles are not
    # vxpose'd per grid step; if they are, store W pre-transposed in
    # pack_params instead.


def pack_params(params):
    """Pack the 8 (W, b) pairs (PyTorch (out, in) / (out,) layout) into two
    zero-padded f32 slabs.  Call ONCE outside the training step and keep the
    slabs as the canonical parameter layout (do not re-pack per forward)."""
    ws, bs = [], []
    for w, b in params:
        out_d, in_d = w.shape
        ws.append(jnp.pad(w.astype(jnp.float32),
                          ((0, H_PAD - out_d), (0, H_PAD - in_d))))
        bs.append(jnp.pad(b.astype(jnp.float32), (0, H_PAD - out_d))[:, None])
    return jnp.stack(ws), jnp.stack(bs)


def _pick_tile(n):
    """Lane tile: multiple of 128, capped at LANE_TILE_CAP, aiming for >= 2
    (and even) grid steps so a 2-TensorCore chip (v7x) keeps both cores busy."""
    n_blocks = pl.cdiv(n, 128)
    if n_blocks <= 1:
        return 128
    tiles = max(2, pl.cdiv(n_blocks * 128, LANE_TILE_CAP))
    if tiles % 2:
        tiles += 1                      # even tile count splits evenly over 2 TCs
    blocks_per_tile = pl.cdiv(n_blocks, tiles)
    return int(max(128, min(LANE_TILE_CAP, blocks_per_tile * 128)))


@functools.partial(jax.jit, static_argnames=("tile_n",))
def dnn_forward_t(x_t, w_slab, b_slab, *, tile_n=None):
    """Hot-path entry.  x_t: [2, N] f32 (batch on lanes), slabs from
    pack_params.  Returns [1, N] f32."""
    _, N = x_t.shape
    if tile_n is None:
        tile_n = _pick_tile(N)
    assert tile_n % 128 == 0

    num_tiles = pl.cdiv(N, tile_n)
    n_pad = num_tiles * tile_n

    x_t = x_t.astype(jnp.float32)
    if n_pad != N:
        x_t = jnp.pad(x_t, ((0, 0), (0, n_pad - N)))     # ragged tail tile

    flops = 2 * n_pad * sum(i * o for i, o in LAYER_DIMS)   # ~4920 * N
    transcendentals = n_pad * 6 * 20                          # six tanh layers
    bytes_accessed = 4 * ((IN_DIM + OUT_DIM) * n_pad + w_slab.size + b_slab.size)

    out = pl.pallas_call(
        _dnn_kernel,
        out_shape=jax.ShapeDtypeStruct((OUT_DIM, n_pad), jnp.float32),
        grid=(num_tiles,),
        in_specs=[
            pl.BlockSpec((IN_DIM, tile_n), lambda i: (0, i)),
            pl.BlockSpec(w_slab.shape, lambda i: (0, 0, 0)),   # resident slab
            pl.BlockSpec(b_slab.shape, lambda i: (0, 0, 0)),   # resident slab
        ],
        out_specs=pl.BlockSpec((OUT_DIM, tile_n), lambda i: (0, i)),
        compiler_params=pltpu.CompilerParams(
            dimension_semantics=("parallel",),
            vmem_limit_bytes=32 * 1024 * 1024),   # > v5e's 16 MiB scoped default
        cost_estimate=pl.CostEstimate(
            flops=flops,
            transcendentals=transcendentals,
            bytes_accessed=bytes_accessed),
    )(x_t, w_slab, b_slab)

    return out[:, :N]                                     # [1, N]


def dnn_forward(x, params, *, tile_n=None):
    """Convenience wrapper from PyTorch-style inputs: x [N, 2], params list of
    (W (out,in), b (out,)).  Inside a training loop prefer: pack_params once
    and keep x stored as [2, N], then call dnn_forward_t directly."""
    w_slab, b_slab = pack_params(params)
    return dnn_forward_t(x.astype(jnp.float32).T, w_slab, b_slab,
                         tile_n=tile_n).T                 # [N, 1]


def init_params(key):
    """Deterministic init mimicking PyTorch Linear default (uniform +-1/sqrt(in)),
    stored in PyTorch layout: W (out, in), b (out,)."""
    params = []
    for fan_in, fan_out in LAYER_DIMS:
        key, kw, kb = jax.random.split(key, 3)
        bound = 1.0 / (fan_in ** 0.5)
        w = jax.random.uniform(kw, (fan_out, fan_in), jnp.float32, -bound, bound)
        b = jax.random.uniform(kb, (fan_out,), jnp.float32, -bound, bound)
        params.append((w, b))
    return params


def dnn_reference(x, params, *, emulate_bf16=False):
    """Pure-JAX reference (PyTorch semantics).  With emulate_bf16=True the
    matmul operands are rounded to bf16 with f32 accumulation, matching the
    kernel's MXU numerics."""
    def mm(a, w):
        if emulate_bf16:
            return jnp.dot(a.astype(jnp.bfloat16), w.T.astype(jnp.bfloat16),
                           preferred_element_type=jnp.float32)
        return jnp.dot(a, w.T, precision=jax.lax.Precision.HIGHEST)

    w, b = params[0]
    h = mm(x, w) + b
    for w, b in params[1:-1]:
        h = jnp.tanh(mm(h, w) + b)
    w, b = params[-1]
    return mm(h, w) + b


if __name__ == "__main__":
    key = jax.random.PRNGKey(0)
    key, kx = jax.random.split(key)

    N = 8  # small batch of (x, t) collocation points
    x = jax.random.normal(kx, (N, 2), dtype=jnp.float32)

    params = init_params(key)

    # Hot-path layout: pack parameters and transpose x ONCE, outside the call.
    w_slab, b_slab = pack_params(params)
    x_t = x.T                                        # [2, N], batch on lanes

    out = dnn_forward_t(x_t, w_slab, b_slab)         # [1, N]
    out = jax.block_until_ready(out).T               # [N, 1]

    assert out.shape == (N, 1)

    # Tight check against a bf16-operand / f32-accumulation reference
    # (matches the kernel's MXU numerics).
    ref_bf16 = dnn_reference(x, params, emulate_bf16=True)
    assert jnp.allclose(out, ref_bf16, atol=5e-3, rtol=5e-3), (out, ref_bf16)

    # Loose sanity check against the full-f32 PyTorch-semantics reference.
    ref_f32 = dnn_reference(x, params, emulate_bf16=False)
    assert jnp.allclose(out, ref_f32, atol=2e-1, rtol=2e-1), (out, ref_f32)

    print("KERNEL_OK")
</pallas_src>

<mosaic_0001>
module attributes {stable_mosaic.version = 11 : i64} {
  func.func @_dnn_kernel(%arg0: i32, %arg1: memref<2x128xf32, #tpu.memory_space<vmem>>, %arg2: memref<8x24x24xf32, #tpu.memory_space<vmem>>, %arg3: memref<8x24x1xf32, #tpu.memory_space<vmem>>, %arg4: memref<1x128xf32, #tpu.memory_space<vmem>>) attributes {dimension_semantics = [#tpu.dimension_semantics<parallel>], iteration_bounds = array<i64: 1>, scalar_prefetch = 0 : i64, scratch_operands = 0 : i64, tpu.core_type = #tpu.core_type<tc>, window_params = [{transform_indices = @transform_0, window_bounds = array<i64: 2, 128>}, {pipeline_mode = #tpu.pipeline_mode<synchronous>, transform_indices = @transform_1, window_bounds = array<i64: 8, 24, 24>}, {pipeline_mode = #tpu.pipeline_mode<synchronous>, transform_indices = @transform_2, window_bounds = array<i64: 8, 24, 1>}, {transform_indices = @transform_3, window_bounds = array<i64: 1, 128>}]} {
    %c0 = arith.constant 0 : index
    %c0_0 = arith.constant 0 : index
    %0 = vector.load %arg1[%c0, %c0_0] : memref<2x128xf32, #tpu.memory_space<vmem>>, vector<2x128xf32>
    %1 = arith.truncf %0 : vector<2x128xf32> to vector<2x128xbf16>
    %c0_1 = arith.constant 0 : index
    %c0_2 = arith.constant 0 : index
    %c0_3 = arith.constant 0 : index
    %2 = vector.load %arg2[%c0_1, %c0_2, %c0_3] : memref<8x24x24xf32, #tpu.memory_space<vmem>>, vector<1x24x24xf32>
    %3 = vector.shape_cast %2 : vector<1x24x24xf32> to vector<24x24xf32>
    %4 = vector.extract_strided_slice %3 {offsets = [0, 0], sizes = [24, 2], strides = [1, 1]} : vector<24x24xf32> to vector<24x2xf32>
    %5 = arith.truncf %4 : vector<24x2xf32> to vector<24x2xbf16>
    %cst = arith.constant dense<0.000000e+00> : vector<24x128xf32>
    %6 = tpu.matmul %5, %1, %cst {dimension_numbers = #tpu.dot_dimension_numbers<[1], [0], [0], [1], [0, 0, 1, 1], [], []>} : vector<24x2xbf16>, vector<2x128xbf16>, vector<24x128xf32> -> vector<24x128xf32>
    %c0_4 = arith.constant 0 : index
    %c0_5 = arith.constant 0 : index
    %c0_6 = arith.constant 0 : index
    %7 = vector.load %arg3[%c0_4, %c0_5, %c0_6] : memref<8x24x1xf32, #tpu.memory_space<vmem>>, vector<1x24x1xf32>
    %8 = vector.shape_cast %7 : vector<1x24x1xf32> to vector<24x1xf32>
    %9 = vector.broadcast %8 : vector<24x1xf32> to vector<24x128xf32>
    %10 = arith.addf %6, %9 : vector<24x128xf32>
    %c1 = arith.constant 1 : index
    %c0_7 = arith.constant 0 : index
    %c0_8 = arith.constant 0 : index
    %11 = vector.load %arg2[%c1, %c0_7, %c0_8] : memref<8x24x24xf32, #tpu.memory_space<vmem>>, vector<1x24x24xf32>
    %12 = vector.shape_cast %11 : vector<1x24x24xf32> to vector<24x24xf32>
    %13 = arith.truncf %12 : vector<24x24xf32> to vector<24x24xbf16>
    %14 = arith.truncf %10 : vector<24x128xf32> to vector<24x128xbf16>
    %cst_9 = arith.constant dense<0.000000e+00> : vector<24x128xf32>
    %15 = tpu.matmul %13, %14, %cst_9 {dimension_numbers = #tpu.dot_dimension_numbers<[1], [0], [0], [1], [0, 0, 1, 1], [], []>} : vector<24x24xbf16>, vector<24x128xbf16>, vector<24x128xf32> -> vector<24x128xf32>
    %c1_10 = arith.constant 1 : index
    %c0_11 = arith.constant 0 : index
    %c0_12 = arith.constant 0 : index
    %16 = vector.load %arg3[%c1_10, %c0_11, %c0_12] : memref<8x24x1xf32, #tpu.memory_space<vmem>>, vector<1x24x1xf32>
    %17 = vector.shape_cast %16 : vector<1x24x1xf32> to vector<24x1xf32>
    %18 = vector.broadcast %17 : vector<24x1xf32> to vector<24x128xf32>
    %19 = arith.addf %15, %18 : vector<24x128xf32>
    %20 = math.tanh %19 : vector<24x128xf32>
    %c2 = arith.constant 2 : index
    %c0_13 = arith.constant 0 : index
    %c0_14 = arith.constant 0 : index
    %21 = vector.load %arg2[%c2, %c0_13, %c0_14] : memref<8x24x24xf32, #tpu.memory_space<vmem>>, vector<1x24x24xf32>
    %22 = vector.shape_cast %21 : vector<1x24x24xf32> to vector<24x24xf32>
    %23 = arith.truncf %22 : vector<24x24xf32> to vector<24x24xbf16>
    %24 = arith.truncf %20 : vector<24x128xf32> to vector<24x128xbf16>
    %cst_15 = arith.constant dense<0.000000e+00> : vector<24x128xf32>
    %25 = tpu.matmul %23, %24, %cst_15 {dimension_numbers = #tpu.dot_dimension_numbers<[1], [0], [0], [1], [0, 0, 1, 1], [], []>} : vector<24x24xbf16>, vector<24x128xbf16>, vector<24x128xf32> -> vector<24x128xf32>
    %c2_16 = arith.constant 2 : index
    %c0_17 = arith.constant 0 : index
    %c0_18 = arith.constant 0 : index
    %26 = vector.load %arg3[%c2_16, %c0_17, %c0_18] : memref<8x24x1xf32, #tpu.memory_space<vmem>>, vector<1x24x1xf32>
    %27 = vector.shape_cast %26 : vector<1x24x1xf32> to vector<24x1xf32>
    %28 = vector.broadcast %27 : vector<24x1xf32> to vector<24x128xf32>
    %29 = arith.addf %25, %28 : vector<24x128xf32>
    %30 = math.tanh %29 : vector<24x128xf32>
    %c3 = arith.constant 3 : index
    %c0_19 = arith.constant 0 : index
    %c0_20 = arith.constant 0 : index
    %31 = vector.load %arg2[%c3, %c0_19, %c0_20] : memref<8x24x24xf32, #tpu.memory_space<vmem>>, vector<1x24x24xf32>
    %32 = vector.shape_cast %31 : vector<1x24x24xf32> to vector<24x24xf32>
    %33 = arith.truncf %32 : vector<24x24xf32> to vector<24x24xbf16>
    %34 = arith.truncf %30 : vector<24x128xf32> to vector<24x128xbf16>
    %cst_21 = arith.constant dense<0.000000e+00> : vector<24x128xf32>
    %35 = tpu.matmul %33, %34, %cst_21 {dimension_numbers = #tpu.dot_dimension_numbers<[1], [0], [0], [1], [0, 0, 1, 1], [], []>} : vector<24x24xbf16>, vector<24x128xbf16>, vector<24x128xf32> -> vector<24x128xf32>
    %c3_22 = arith.constant 3 : index
    %c0_23 = arith.constant 0 : index
    %c0_24 = arith.constant 0 : index
    %36 = vector.load %arg3[%c3_22, %c0_23, %c0_24] : memref<8x24x1xf32, #tpu.memory_space<vmem>>, vector<1x24x1xf32>
    %37 = vector.shape_cast %36 : vector<1x24x1xf32> to vector<24x1xf32>
    %38 = vector.broadcast %37 : vector<24x1xf32> to vector<24x128xf32>
    %39 = arith.addf %35, %38 : vector<24x128xf32>
    %40 = math.tanh %39 : vector<24x128xf32>
    %c4 = arith.constant 4 : index
    %c0_25 = arith.constant 0 : index
    %c0_26 = arith.constant 0 : index
    %41 = vector.load %arg2[%c4, %c0_25, %c0_26] : memref<8x24x24xf32, #tpu.memory_space<vmem>>, vector<1x24x24xf32>
    %42 = vector.shape_cast %41 : vector<1x24x24xf32> to vector<24x24xf32>
    %43 = arith.truncf %42 : vector<24x24xf32> to vector<24x24xbf16>
    %44 = arith.truncf %40 : vector<24x128xf32> to vector<24x128xbf16>
    %cst_27 = arith.constant dense<0.000000e+00> : vector<24x128xf32>
    %45 = tpu.matmul %43, %44, %cst_27 {dimension_numbers = #tpu.dot_dimension_numbers<[1], [0], [0], [1], [0, 0, 1, 1], [], []>} : vector<24x24xbf16>, vector<24x128xbf16>, vector<24x128xf32> -> vector<24x128xf32>
    %c4_28 = arith.constant 4 : index
    %c0_29 = arith.constant 0 : index
    %c0_30 = arith.constant 0 : index
    %46 = vector.load %arg3[%c4_28, %c0_29, %c0_30] : memref<8x24x1xf32, #tpu.memory_space<vmem>>, vector<1x24x1xf32>
    %47 = vector.shape_cast %46 : vector<1x24x1xf32> to vector<24x1xf32>
    %48 = vector.broadcast %47 : vector<24x1xf32> to vector<24x128xf32>
    %49 = arith.addf %45, %48 : vector<24x128xf32>
    %50 = math.tanh %49 : vector<24x128xf32>
    %c5 = arith.constant 5 : index
    %c0_31 = arith.constant 0 : index
    %c0_32 = arith.constant 0 : index
    %51 = vector.load %arg2[%c5, %c0_31, %c0_32] : memref<8x24x24xf32, #tpu.memory_space<vmem>>, vector<1x24x24xf32>
    %52 = vector.shape_cast %51 : vector<1x24x24xf32> to vector<24x24xf32>
    %53 = arith.truncf %52 : vector<24x24xf32> to vector<24x24xbf16>
    %54 = arith.truncf %50 : vector<24x128xf32> to vector<24x128xbf16>
    %cst_33 = arith.constant dense<0.000000e+00> : vector<24x128xf32>
    %55 = tpu.matmul %53, %54, %cst_33 {dimension_numbers = #tpu.dot_dimension_numbers<[1], [0], [0], [1], [0, 0, 1, 1], [], []>} : vector<24x24xbf16>, vector<24x128xbf16>, vector<24x128xf32> -> vector<24x128xf32>
    %c5_34 = arith.constant 5 : index
    %c0_35 = arith.constant 0 : index
    %c0_36 = arith.constant 0 : index
    %56 = vector.load %arg3[%c5_34, %c0_35, %c0_36] : memref<8x24x1xf32, #tpu.memory_space<vmem>>, vector<1x24x1xf32>
    %57 = vector.shape_cast %56 : vector<1x24x1xf32> to vector<24x1xf32>
    %58 = vector.broadcast %57 : vector<24x1xf32> to vector<24x128xf32>
    %59 = arith.addf %55, %58 : vector<24x128xf32>
    %60 = math.tanh %59 : vector<24x128xf32>
    %c6 = arith.constant 6 : index
    %c0_37 = arith.constant 0 : index
    %c0_38 = arith.constant 0 : index
    %61 = vector.load %arg2[%c6, %c0_37, %c0_38] : memref<8x24x24xf32, #tpu.memory_space<vmem>>, vector<1x24x24xf32>
    %62 = vector.shape_cast %61 : vector<1x24x24xf32> to vector<24x24xf32>
    %63 = arith.truncf %62 : vector<24x24xf32> to vector<24x24xbf16>
    %64 = arith.truncf %60 : vector<24x128xf32> to vector<24x128xbf16>
    %cst_39 = arith.constant dense<0.000000e+00> : vector<24x128xf32>
    %65 = tpu.matmul %63, %64, %cst_39 {dimension_numbers = #tpu.dot_dimension_numbers<[1], [0], [0], [1], [0, 0, 1, 1], [], []>} : vector<24x24xbf16>, vector<24x128xbf16>, vector<24x128xf32> -> vector<24x128xf32>
    %c6_40 = arith.constant 6 : index
    %c0_41 = arith.constant 0 : index
    %c0_42 = arith.constant 0 : index
    %66 = vector.load %arg3[%c6_40, %c0_41, %c0_42] : memref<8x24x1xf32, #tpu.memory_space<vmem>>, vector<1x24x1xf32>
    %67 = vector.shape_cast %66 : vector<1x24x1xf32> to vector<24x1xf32>
    %68 = vector.broadcast %67 : vector<24x1xf32> to vector<24x128xf32>
    %69 = arith.addf %65, %68 : vector<24x128xf32>
    %70 = math.tanh %69 : vector<24x128xf32>
    %c7 = arith.constant 7 : index
    %c0_43 = arith.constant 0 : index
    %c0_44 = arith.constant 0 : index
    %71 = vector.load %arg2[%c7, %c0_43, %c0_44] : memref<8x24x24xf32, #tpu.memory_space<vmem>>, vector<1x24x24xf32>
    %72 = vector.shape_cast %71 : vector<1x24x24xf32> to vector<24x24xf32>
    %73 = vector.extract_strided_slice %72 {offsets = [0, 0], sizes = [8, 24], strides = [1, 1]} : vector<24x24xf32> to vector<8x24xf32>
    %74 = arith.truncf %73 : vector<8x24xf32> to vector<8x24xbf16>
    %75 = arith.truncf %70 : vector<24x128xf32> to vector<24x128xbf16>
    %cst_45 = arith.constant dense<0.000000e+00> : vector<8x128xf32>
    %76 = tpu.matmul %74, %75, %cst_45 {dimension_numbers = #tpu.dot_dimension_numbers<[1], [0], [0], [1], [0, 0, 1, 1], [], []>} : vector<8x24xbf16>, vector<24x128xbf16>, vector<8x128xf32> -> vector<8x128xf32>
    %c7_46 = arith.constant 7 : index
    %c0_47 = arith.constant 0 : index
    %c0_48 = arith.constant 0 : index
    %77 = vector.load %arg3[%c7_46, %c0_47, %c0_48] : memref<8x24x1xf32, #tpu.memory_space<vmem>>, vector<1x24x1xf32>
    %78 = vector.shape_cast %77 : vector<1x24x1xf32> to vector<24x1xf32>
    %79 = vector.extract_strided_slice %78 {offsets = [0, 0], sizes = [8, 1], strides = [1, 1]} : vector<24x1xf32> to vector<8x1xf32>
    %80 = vector.broadcast %79 : vector<8x1xf32> to vector<8x128xf32>
    %81 = arith.addf %76, %80 : vector<8x128xf32>
    %82 = vector.extract_strided_slice %81 {offsets = [0, 0], sizes = [1, 128], strides = [1, 1]} : vector<8x128xf32> to vector<1x128xf32>
    %c0_49 = arith.constant 0 : index
    %c0_50 = arith.constant 0 : index
    %83 = vector.load %arg4[%c0_49, %c0_50] : memref<1x128xf32, #tpu.memory_space<vmem>>, vector<1x128xf32>
    tpu.vector_store %arg4[%c0_49, %c0_50], %82 {strides = array<i32>} : memref<1x128xf32, #tpu.memory_space<vmem>>, vector<1x128xf32>,
    return
  }
  func.func @transform_0(%arg0: i32) -> (i32, i32) {
    %c0_i32 = arith.constant 0 : i32
    %c0_i32_0 = arith.constant 0 : i32
    return %c0_i32, %arg0 : i32, i32
  }
  func.func @transform_1(%arg0: i32) -> (i32, i32, i32) {
    %c0_i32 = arith.constant 0 : i32
    %c0_i32_0 = arith.constant 0 : i32
    %c0_i32_1 = arith.constant 0 : i32
    %c0_i32_2 = arith.constant 0 : i32
    return %c0_i32, %c0_i32_0, %c0_i32_1 : i32, i32, i32
  }
  func.func @transform_2(%arg0: i32) -> (i32, i32, i32) {
    %c0_i32 = arith.constant 0 : i32
    %c0_i32_0 = arith.constant 0 : i32
    %c0_i32_1 = arith.constant 0 : i32
    %c0_i32_2 = arith.constant 0 : i32
    return %c0_i32, %c0_i32_0, %c0_i32_1 : i32, i32, i32
  }
  func.func @transform_3(%arg0: i32) -> (i32, i32) {
    %c0_i32 = arith.constant 0 : i32
    %c0_i32_0 = arith.constant 0 : i32
    return %c0_i32, %arg0 : i32, i32
  }
}

</mosaic_0001>

<llo_original>
// kernel: dnn_forward_t.1
$region0: #{dnn_forward_t.1}
  #allocation0 [shape = 'u32[]', space=smem, size = 0x4, offset = 0x4, fixed_abs, tag = 'smem constant byte address 0x4 - core index']
  #allocation1 [shape = 'u32[144,128]{1,0:T(1,128)}', space=vmem, size = 0x12000, scoped, tag = 'internal scratch']
  %s0 = inlined_call_operand.vmem [shape: f32[2,128], index: 0, kind: input, shape index: {}]
  %s1 = inlined_call_operand.vmem [shape: f32[8,24,24], index: 1, kind: input, shape index: {}]
  %s2 = inlined_call_operand.vmem [shape: f32[8,24,1], index: 2, kind: input, shape index: {}]
  %s3 = inlined_call_operand.hbm [shape: f32[1,128], index: 3, kind: output, shape index: {}]
  %s4 = sld [smem:[#allocation0]]
  $region22: #{dnn_forward_t.1} parent=0
    _
  %s6 = ssub.s32 1, %s4
  %s7 = scalar_select 0, %s6, %s4
  $region1: #{dnn_forward_t.1} parent=0
    #allocation2 [shape = 'u8[512]{0}', space=vmem, size = 0x400, scoped, tag = 'output window, operand 0, single buffered']
    #allocation3 [shape = 's32[1]{0}', space=sflag, size = 0x4, scoped, tag = 'scoped memory for dnn_forward_t.1']
    %8 = vsyncpa [#allocation3], 0
    // Predicated region
    $region2: #{dnn_forward_t.1} parent=1 // pred_check
      _
    $region3: #{dnn_forward_t.1} parent=1 // pred_check_branch
      %10 = sbr.rel (0) target = $region5
    $region4: #{dnn_forward_t.1} parent=1 // pred_region
      _
    $region5: #{dnn_forward_t.1} parent=1 // pred_fallthru
      _
    // Predicated region
    $region6: #{dnn_forward_t.1} parent=1 // pred_check
      _
    $region7: #{dnn_forward_t.1} parent=1 // pred_check_branch
      %12 = sbr.rel (0) target = $region9
    $region8: #{dnn_forward_t.1} parent=1 // pred_region
      _
    $region9: #{dnn_forward_t.1} parent=1 // pred_fallthru
      _
    // Predicated region
    $region10: #{dnn_forward_t.1} parent=1 // pred_check
      _
    $region11: #{dnn_forward_t.1} parent=1 // pred_check_branch
      %14 = sbr.rel (0) target = $region13
    $region12: #{dnn_forward_t.1} parent=1 // pred_region
      _
    $region13: #{dnn_forward_t.1} parent=1 // pred_fallthru
      _
    %v16 = vld [vmem:[%s0] sm:$0x3]
    %v17 = vpack.c.bf16 %v16, %v16
    %v18 = vld [vmem:[%s1] sm:$0xff]
    %v19 = vld [vmem:[%s1 + $0x8] sm:$0xff]
    %v20 = vld [vmem:[%s1 + $0x10] sm:$0xff]
    %v21 = vpack.c.bf16 %v19, %v18
    %v22 = vpack.c.bf16 %v20, %v20
    %v23 = vld [vmem:[%s2] sm:$0xff]
    %v24 = vld [vmem:[%s2 + $0x8] sm:$0xff]
    %v25 = vld [vmem:[%s2 + $0x10] sm:$0xff]
    %27 = vset.pattern.permute.xlu0 0
    %28 = vperm.xlu0 %27, %v23
    %v29 = vpop.permute.xlu0 %28
    %32 = vset.pattern.permute.xlu0 0
    %33 = vperm.xlu0 %32, %v24
    %v34 = vpop.permute.xlu0 %33
    %37 = vset.pattern.permute.xlu0 0
    %38 = vperm.xlu0 %37, %v25
    %v39 = vpop.permute.xlu0 %38
    %vm41 = vcmask 15360
    %v43 = vsel %vm41, %v21, 0
    %v46 = vsel %vm41, %v22, 0
    %vm48 = vcmask 1040384
    %v50 = vsel %vm48, %v17, 0
    %52 = vmatprep.subr.bf16.mxu0 0
    %53 = vmatpush1.bf16.msra.mxu0 %v50
    %54 = vmatprep.subr.bf16.mxu0 0
    %55 = vmatpush1.bf16.msra.mxu0 0
    %56 = vmatprep.subr.bf16.mxu0 0
    %57 = vmatpush1.bf16.msra.mxu0 0
    %58 = vmatprep.subr.bf16.mxu0 0
    %59 = vmatpush1.bf16.msra.mxu0 0
    %60 = vmatprep.subr.bf16.mxu0 0
    %61 = vmatpush1.bf16.msra.mxu0 0
    %62 = vmatprep.subr.bf16.mxu0 0
    %63 = vmatpush1.bf16.msra.mxu0 0
    %64 = vmatprep.subr.bf16.mxu0 0
    %65 = vmatpush1.bf16.msra.mxu0 0
    %66 = vmatprep.subr.bf16.mxu0 0
    %67 = vmatpush1.bf16.msra.mxu0 0
    %68 = vmatprep.subr.bf16.mxu0 0
    %69 = vmatpush1.bf16.msra.mxu0 0
    %70 = vmatprep.subr.bf16.mxu0 0
    %71 = vmatpush1.bf16.msra.mxu0 0
    %72 = vmatprep.subr.bf16.mxu0 0
    %73 = vmatpush1.bf16.msra.mxu0 0
    %74 = vmatprep.subr.bf16.mxu0 0
    %75 = vmatpush1.bf16.msra.mxu0 0
    %76 = vmatprep.subr.bf16.mxu0 0
    %77 = vmatpush1.bf16.msra.mxu0 0
    %78 = vmatprep.subr.bf16.mxu0 0
    %79 = vmatpush1.bf16.msra.mxu0 0
    %80 = vmatprep.subr.bf16.mxu0 0
    %81 = vmatpush1.bf16.msra.mxu0 0
    %82 = vmatprep.subr.bf16.mxu0 0
    %83 = vmatpush1.bf16.msra.mxu0 0
    %84 = vmatprep.mubr.bf16.mxu0 0
    %85 = vmatmul.mubr.bf16.gmra.mrb[0].mxu0 %v43
    %v86 = vpop.f32.mrb[0].mxu0
    %v87 = vadd.f32 %v29, %v86
    %v88 = vpop.f32.mrb[0].mxu0
    %v89 = vpop.f32.mrb[0].mxu0
    %v90 = vadd.f32 %v34, %v89
    %v91 = vpop.f32.mrb[0].mxu0
    %92 = vmatprep.mubr.bf16.mxu0 0
    %93 = vmatmul.mubr.bf16.gmra.mrb[0].mxu0 %v46
    %v94 = vpop.f32.mrb[0].mxu0
    %v95 = vadd.f32 %v39, %v94
    %v96 = vpop.f32.mrb[0].mxu0
    %v97 = vpop.f32.mrb[0].mxu0
    %v98 = vpop.f32.mrb[0].mxu0
    %99 = vdwg.mxu0
    %s100 = scalar_lea.vmem %s1, 24
    %v101 = vld [vmem:[%s100] sm:$0xff]
    %v102 = vld [vmem:[%s100 + $0x8] sm:$0xff]
    %v103 = vld [vmem:[%s100 + $0x10] sm:$0xff]
    %v104 = vpack.c.bf16 %v102, %v101
    %v105 = vpack.c.bf16 %v103, %v103
    %v106 = vpack.c.bf16 %v90, %v87
    %v107 = vpack.c.bf16 %v95, %v95
    %s108 = scalar_lea.vmem %s2, 24
    %v109 = vld [vmem:[%s108] sm:$0xff]
    %v110 = vld [vmem:[%s108 + $0x8] sm:$0xff]
    %v111 = vld [vmem:[%s108 + $0x10] sm:$0xff]
    %113 = vset.pattern.permute.xlu0 0
    %114 = vperm.xlu0 %113, %v109
    %v115 = vpop.permute.xlu0 %114
    %118 = vset.pattern.permute.xlu0 0
    %119 = vperm.xlu0 %118, %v110
    %v120 = vpop.permute.xlu0 %119
    %123 = vset.pattern.permute.xlu0 0
    %124 = vperm.xlu0 %123, %v111
    %v125 = vpop.permute.xlu0 %124
    %vm127 = vcmask 195584
    %v129 = vsel %vm127, %v104, 0
    %v132 = vsel %vm127, %v105, 0
    %vm134 = vcmask 1043456
    %v136 = vsel %vm134, %v107, 0
    %138 = vmatprep.subr.bf16.mxu0 0
    %139 = vmatpush1.bf16.msra.mxu0 %v106
    %140 = vmatprep.subr.bf16.mxu0 0
    %141 = vmatpush1.bf16.msra.mxu0 %v136
    %142 = vmatprep.subr.bf16.mxu0 0
    %143 = vmatpush1.bf16.msra.mxu0 0
    %144 = vmatprep.subr.bf16.mxu0 0
    %145 = vmatpush1.bf16.msra.mxu0 0
    %146 = vmatprep.subr.bf16.mxu0 0
    %147 = vmatpush1.bf16.msra.mxu0 0
    %148 = vmatprep.subr.bf16.mxu0 0
    %149 = vmatpush1.bf16.msra.mxu0 0
    %150 = vmatprep.subr.bf16.mxu0 0
    %151 = vmatpush1.bf16.msra.mxu0 0
    %152 = vmatprep.subr.bf16.mxu0 0
    %153 = vmatpush1.bf16.msra.mxu0 0
    %154 = vmatprep.subr.bf16.mxu0 0
    %155 = vmatpush1.bf16.msra.mxu0 0
    %156 = vmatprep.subr.bf16.mxu0 0
    %157 = vmatpush1.bf16.msra.mxu0 0
    %158 = vmatprep.subr.bf16.mxu0 0
    %159 = vmatpush1.bf16.msra.mxu0 0
    %160 = vmatprep.subr.bf16.mxu0 0
    %161 = vmatpush1.bf16.msra.mxu0 0
    %162 = vmatprep.subr.bf16.mxu0 0
    %163 = vmatpush1.bf16.msra.mxu0 0
    %164 = vmatprep.subr.bf16.mxu0 0
    %165 = vmatpush1.bf16.msra.mxu0 0
    %166 = vmatprep.subr.bf16.mxu0 0
    %167 = vmatpush1.bf16.msra.mxu0 0
    %168 = vmatprep.subr.bf16.mxu0 0
    %169 = vmatpush1.bf16.msra.mxu0 0
    %170 = vmatprep.mubr.bf16.mxu0 0
    %171 = vmatmul.mubr.bf16.gmra.mrb[0].mxu0 %v129
    %v172 = vpop.f32.mrb[0].mxu0
    %v173 = vadd.f32 %v115, %v172
    %v174 = vpop.f32.mrb[0].mxu0
    %v175 = vpop.f32.mrb[0].mxu0
    %v176 = vadd.f32 %v120, %v175
    %v177 = vpop.f32.mrb[0].mxu0
    %178 = vmatprep.mubr.bf16.mxu0 0
    %179 = vmatmul.mubr.bf16.gmra.mrb[0].mxu0 %v132
    %v180 = vpop.f32.mrb[0].mxu0
    %v181 = vadd.f32 %v125, %v180
    %v182 = vpop.f32.mrb[0].mxu0
    %v183 = vpop.f32.mrb[0].mxu0
    %v184 = vpop.f32.mrb[0].mxu0
    %185 = vdwg.mxu0
    %v186 = vtanh.pop %v173
    %v187 = vtanh.pop %v176
    %v188 = vtanh.pop %v181
    %s189 = scalar_lea.vmem %s1, 48
    %v190 = vld [vmem:[%s189] sm:$0xff]
    %v191 = vld [vmem:[%s189 + $0x8] sm:$0xff]
    %v192 = vld [vmem:[%s189 + $0x10] sm:$0xff]
    %v193 = vpack.c.bf16 %v191, %v190
    %v194 = vpack.c.bf16 %v192, %v192
    %v195 = vpack.c.bf16 %v187, %v186
    %v196 = vpack.c.bf16 %v188, %v188
    %s197 = scalar_lea.vmem %s2, 48
    %v198 = vld [vmem:[%s197] sm:$0xff]
    %v199 = vld [vmem:[%s197 + $0x8] sm:$0xff]
    %v200 = vld [vmem:[%s197 + $0x10] sm:$0xff]
    %202 = vset.pattern.permute.xlu0 0
    %203 = vperm.xlu0 %202, %v198
    %v204 = vpop.permute.xlu0 %203
    %207 = vset.pattern.permute.xlu0 0
    %208 = vperm.xlu0 %207, %v199
    %v209 = vpop.permute.xlu0 %208
    %212 = vset.pattern.permute.xlu0 0
    %213 = vperm.xlu0 %212, %v200
    %v214 = vpop.permute.xlu0 %213
    %v217 = vsel %vm127, %v193, 0
    %v220 = vsel %vm127, %v194, 0
    %v223 = vsel %vm134, %v196, 0
    %225 = vmatprep.subr.bf16.mxu0 0
    %226 = vmatpush1.bf16.msra.mxu0 %v195
    %227 = vmatprep.subr.bf16.mxu0 0
    %228 = vmatpush1.bf16.msra.mxu0 %v223
    %229 = vmatprep.subr.bf16.mxu0 0
    %230 = vmatpush1.bf16.msra.mxu0 0
    %231 = vmatprep.subr.bf16.mxu0 0
    %232 = vmatpush1.bf16.msra.mxu0 0
    %233 = vmatprep.subr.bf16.mxu0 0
    %234 = vmatpush1.bf16.msra.mxu0 0
    %235 = vmatprep.subr.bf16.mxu0 0
    %236 = vmatpush1.bf16.msra.mxu0 0
    %237 = vmatprep.subr.bf16.mxu0 0
    %238 = vmatpush1.bf16.msra.mxu0 0
    %239 = vmatprep.subr.bf16.mxu0 0
    %240 = vmatpush1.bf16.msra.mxu0 0
    %241 = vmatprep.subr.bf16.mxu0 0
    %242 = vmatpush1.bf16.msra.mxu0 0
    %243 = vmatprep.subr.bf16.mxu0 0
    %244 = vmatpush1.bf16.msra.mxu0 0
    %245 = vmatprep.subr.bf16.mxu0 0
    %246 = vmatpush1.bf16.msra.mxu0 0
    %247 = vmatprep.subr.bf16.mxu0 0
    %248 = vmatpush1.bf16.msra.mxu0 0
    %249 = vmatprep.subr.bf16.mxu0 0
    %250 = vmatpush1.bf16.msra.mxu0 0
    %251 = vmatprep.subr.bf16.mxu0 0
    %252 = vmatpush1.bf16.msra.mxu0 0
    %253 = vmatprep.subr.bf16.mxu0 0
    %254 = vmatpush1.bf16.msra.mxu0 0
    %255 = vmatprep.subr.bf16.mxu0 0
    %256 = vmatpush1.bf16.msra.mxu0 0
    %257 = vmatprep.mubr.bf16.mxu0 0
    %258 = vmatmul.mubr.bf16.gmra.mrb[0].mxu0 %v217
    %v259 = vpop.f32.mrb[0].mxu0
    %v260 = vadd.f32 %v204, %v259
    %v261 = vpop.f32.mrb[0].mxu0
    %v262 = vpop.f32.mrb[0].mxu0
    %v263 = vadd.f32 %v209, %v262
    %v264 = vpop.f32.mrb[0].mxu0
    %265 = vmatprep.mubr.bf16.mxu0 0
    %266 = vmatmul.mubr.bf16.gmra.mrb[0].mxu0 %v220
    %v267 = vpop.f32.mrb[0].mxu0
    %v268 = vadd.f32 %v214, %v267
    %v269 = vpop.f32.mrb[0].mxu0
    %v270 = vpop.f32.mrb[0].mxu0
    %v271 = vpop.f32.mrb[0].mxu0
    %272 = vdwg.mxu0
    %v273 = vtanh.pop %v260
    %v274 = vtanh.pop %v263
    %v275 = vtanh.pop %v268
    %s276 = scalar_lea.vmem %s1, 72
    %v277 = vld [vmem:[%s276] sm:$0xff]
    %v278 = vld [vmem:[%s276 + $0x8] sm:$0xff]
    %v279 = vld [vmem:[%s276 + $0x10] sm:$0xff]
    %v280 = vpack.c.bf16 %v278, %v277
    %v281 = vpack.c.bf16 %v279, %v279
    %v282 = vpack.c.bf16 %v274, %v273
    %v283 = vpack.c.bf16 %v275, %v275
    %s284 = scalar_lea.vmem %s2, 72
    %v285 = vld [vmem:[%s284] sm:$0xff]
    %v286 = vld [vmem:[%s284 + $0x8] sm:$0xff]
    %v287 = vld [vmem:[%s284 + $0x10] sm:$0xff]
    %289 = vset.pattern.permute.xlu0 0
    %290 = vperm.xlu0 %289, %v285
    %v291 = vpop.permute.xlu0 %290
    %294 = vset.pattern.permute.xlu0 0
    %295 = vperm.xlu0 %294, %v286
    %v296 = vpop.permute.xlu0 %295
    %299 = vset.pattern.permute.xlu0 0
    %300 = vperm.xlu0 %299, %v287
    %v301 = vpop.permute.xlu0 %300
    %v304 = vsel %vm127, %v280, 0
    %v307 = vsel %vm127, %v281, 0
    %v310 = vsel %vm134, %v283, 0
    %312 = vmatprep.subr.bf16.mxu0 0
    %313 = vmatpush1.bf16.msra.mxu0 %v282
    %314 = vmatprep.subr.bf16.mxu0 0
    %315 = vmatpush1.bf16.msra.mxu0 %v310
    %316 = vmatprep.subr.bf16.mxu0 0
    %317 = vmatpush1.bf16.msra.mxu0 0
    %318 = vmatprep.subr.bf16.mxu0 0
    %319 = vmatpush1.bf16.msra.mxu0 0
    %320 = vmatprep.subr.bf16.mxu0 0
    %321 = vmatpush1.bf16.msra.mxu0 0
    %322 = vmatprep.subr.bf16.mxu0 0
    %323 = vmatpush1.bf16.msra.mxu0 0
    %324 = vmatprep.subr.bf16.mxu0 0
    %325 = vmatpush1.bf16.msra.mxu0 0
    %326 = vmatprep.subr.bf16.mxu0 0
    %327 = vmatpush1.bf16.msra.mxu0 0
    %328 = vmatprep.subr.bf16.mxu0 0
    %329 = vmatpush1.bf16.msra.mxu0 0
    %330 = vmatprep.subr.bf16.mxu0 0
    %331 = vmatpush1.bf16.msra.mxu0 0
    %332 = vmatprep.subr.bf16.mxu0 0
    %333 = vmatpush1.bf16.msra.mxu0 0
    %334 = vmatprep.subr.bf16.mxu0 0
    %335 = vmatpush1.bf16.msra.mxu0 0
    %336 = vmatprep.subr.bf16.mxu0 0
    %337 = vmatpush1.bf16.msra.mxu0 0
    %338 = vmatprep.subr.bf16.mxu0 0
    %339 = vmatpush1.bf16.msra.mxu0 0
    %340 = vmatprep.subr.bf16.mxu0 0
    %341 = vmatpush1.bf16.msra.mxu0 0
    %342 = vmatprep.subr.bf16.mxu0 0
    %343 = vmatpush1.bf16.msra.mxu0 0
    %344 = vmatprep.mubr.bf16.mxu0 0
    %345 = vmatmul.mubr.bf16.gmra.mrb[0].mxu0 %v304
    %v346 = vpop.f32.mrb[0].mxu0
    %v347 = vadd.f32 %v291, %v346
    %v348 = vpop.f32.mrb[0].mxu0
    %v349 = vpop.f32.mrb[0].mxu0
    %v350 = vadd.f32 %v296, %v349
    %v351 = vpop.f32.mrb[0].mxu0
    %352 = vmatprep.mubr.bf16.mxu0 0
    %353 = vmatmul.mubr.bf16.gmra.mrb[0].mxu0 %v307
    %v354 = vpop.f32.mrb[0].mxu0
    %v355 = vadd.f32 %v301, %v354
    %v356 = vpop.f32.mrb[0].mxu0
    %v357 = vpop.f32.mrb[0].mxu0
    %v358 = vpop.f32.mrb[0].mxu0
    %359 = vdwg.mxu0
    %v360 = vtanh.pop %v347
    %v361 = vtanh.pop %v350
    %v362 = vtanh.pop %v355
    %s363 = scalar_lea.vmem %s1, 96
    %v364 = vld [vmem:[%s363] sm:$0xff]
    %v365 = vld [vmem:[%s363 + $0x8] sm:$0xff]
    %v366 = vld [vmem:[%s363 + $0x10] sm:$0xff]
    %v367 = vpack.c.bf16 %v365, %v364
    %v368 = vpack.c.bf16 %v366, %v366
    %v369 = vpack.c.bf16 %v361, %v360
    %v370 = vpack.c.bf16 %v362, %v362
    %s371 = scalar_lea.vmem %s2, 96
    %v372 = vld [vmem:[%s371] sm:$0xff]
    %v373 = vld [vmem:[%s371 + $0x8] sm:$0xff]
    %v374 = vld [vmem:[%s371 + $0x10] sm:$0xff]
    %376 = vset.pattern.permute.xlu0 0
    %377 = vperm.xlu0 %376, %v372
    %v378 = vpop.permute.xlu0 %377
    %381 = vset.pattern.permute.xlu0 0
    %382 = vperm.xlu0 %381, %v373
    %v383 = vpop.permute.xlu0 %382
    %386 = vset.pattern.permute.xlu0 0
    %387 = vperm.xlu0 %386, %v374
    %v388 = vpop.permute.xlu0 %387
    %v391 = vsel %vm127, %v367, 0
    %v394 = vsel %vm127, %v368, 0
    %v397 = vsel %vm134, %v370, 0
    %399 = vmatprep.subr.bf16.mxu0 0
    %400 = vmatpush1.bf16.msra.mxu0 %v369
    %401 = vmatprep.subr.bf16.mxu0 0
    %402 = vmatpush1.bf16.msra.mxu0 %v397
    %403 = vmatprep.subr.bf16.mxu0 0
    %404 = vmatpush1.bf16.msra.mxu0 0
    %405 = vmatprep.subr.bf16.mxu0 0
    %406 = vmatpush1.bf16.msra.mxu0 0
    %407 = vmatprep.subr.bf16.mxu0 0
    %408 = vmatpush1.bf16.msra.mxu0 0
    %409 = vmatprep.subr.bf16.mxu0 0
    %410 = vmatpush1.bf16.msra.mxu0 0
    %411 = vmatprep.subr.bf16.mxu0 0
    %412 = vmatpush1.bf16.msra.mxu0 0
    %413 = vmatprep.subr.bf16.mxu0 0
    %414 = vmatpush1.bf16.msra.mxu0 0
    %415 = vmatprep.subr.bf16.mxu0 0
    %416 = vmatpush1.bf16.msra.mxu0 0
    %417 = vmatprep.subr.bf16.mxu0 0
    %418 = vmatpush1.bf16.msra.mxu0 0
    %419 = vmatprep.subr.bf16.mxu0 0
    %420 = vmatpush1.bf16.msra.mxu0 0
    %421 = vmatprep.subr.bf16.mxu0 0
    %422 = vmatpush1.bf16.msra.mxu0 0
    %423 = vmatprep.subr.bf16.mxu0 0
    %424 = vmatpush1.bf16.msra.mxu0 0
    %425 = vmatprep.subr.bf16.mxu0 0
    %426 = vmatpush1.bf16.msra.mxu0 0
    %427 = vmatprep.subr.bf16.mxu0 0
    %428 = vmatpush1.bf16.msra.mxu0 0
    %429 = vmatprep.subr.bf16.mxu0 0
    %430 = vmatpush1.bf16.msra.mxu0 0
    %431 = vmatprep.mubr.bf16.mxu0 0
    %432 = vmatmul.mubr.bf16.gmra.mrb[0].mxu0 %v391
    %v433 = vpop.f32.mrb[0].mxu0
    %v434 = vadd.f32 %v378, %v433
    %v435 = vpop.f32.mrb[0].mxu0
    %v436 = vpop.f32.mrb[0].mxu0
    %v437 = vadd.f32 %v383, %v436
    %v438 = vpop.f32.mrb[0].mxu0
    %439 = vmatprep.mubr.bf16.mxu0 0
    %440 = vmatmul.mubr.bf16.gmra.mrb[0].mxu0 %v394
    %v441 = vpop.f32.mrb[0].mxu0
    %v442 = vadd.f32 %v388, %v441
    %v443 = vpop.f32.mrb[0].mxu0
    %v444 = vpop.f32.mrb[0].mxu0
    %v445 = vpop.f32.mrb[0].mxu0
    %446 = vdwg.mxu0
    %v447 = vtanh.pop %v434
    %v448 = vtanh.pop %v437
    %v449 = vtanh.pop %v442
    %s450 = scalar_lea.vmem %s1, 120
    %v451 = vld [vmem:[%s450] sm:$0xff]
    %v452 = vld [vmem:[%s450 + $0x8] sm:$0xff]
    %v453 = vld [vmem:[%s450 + $0x10] sm:$0xff]
    %v454 = vpack.c.bf16 %v452, %v451
    %v455 = vpack.c.bf16 %v453, %v453
    %v456 = vpack.c.bf16 %v448, %v447
    %v457 = vpack.c.bf16 %v449, %v449
    %s458 = scalar_lea.vmem %s2, 120
    %v459 = vld [vmem:[%s458] sm:$0xff]
    %v460 = vld [vmem:[%s458 + $0x8] sm:$0xff]
    %v461 = vld [vmem:[%s458 + $0x10] sm:$0xff]
    %463 = vset.pattern.permute.xlu0 0
    %464 = vperm.xlu0 %463, %v459
    %v465 = vpop.permute.xlu0 %464
    %468 = vset.pattern.permute.xlu0 0
    %469 = vperm.xlu0 %468, %v460
    %v470 = vpop.permute.xlu0 %469
    %473 = vset.pattern.permute.xlu0 0
    %474 = vperm.xlu0 %473, %v461
    %v475 = vpop.permute.xlu0 %474
    %v478 = vsel %vm127, %v454, 0
    %v481 = vsel %vm127, %v455, 0
    %v484 = vsel %vm134, %v457, 0
    %486 = vmatprep.subr.bf16.mxu0 0
    %487 = vmatpush1.bf16.msra.mxu0 %v456
    %488 = vmatprep.subr.bf16.mxu0 0
    %489 = vmatpush1.bf16.msra.mxu0 %v484
    %490 = vmatprep.subr.bf16.mxu0 0
    %491 = vmatpush1.bf16.msra.mxu0 0
    %492 = vmatprep.subr.bf16.mxu0 0
    %493 = vmatpush1.bf16.msra.mxu0 0
    %494 = vmatprep.subr.bf16.mxu0 0
    %495 = vmatpush1.bf16.msra.mxu0 0
    %496 = vmatprep.subr.bf16.mxu0 0
    %497 = vmatpush1.bf16.msra.mxu0 0
    %498 = vmatprep.subr.bf16.mxu0 0
    %499 = vmatpush1.bf16.msra.mxu0 0
    %500 = vmatprep.subr.bf16.mxu0 0
    %501 = vmatpush1.bf16.msra.mxu0 0
    %502 = vmatprep.subr.bf16.mxu0 0
    %503 = vmatpush1.bf16.msra.mxu0 0
    %504 = vmatprep.subr.bf16.mxu0 0
    %505 = vmatpush1.bf16.msra.mxu0 0
    %506 = vmatprep.subr.bf16.mxu0 0
    %507 = vmatpush1.bf16.msra.mxu0 0
    %508 = vmatprep.subr.bf16.mxu0 0
    %509 = vmatpush1.bf16.msra.mxu0 0
    %510 = vmatprep.subr.bf16.mxu0 0
    %511 = vmatpush1.bf16.msra.mxu0 0
    %512 = vmatprep.subr.bf16.mxu0 0
    %513 = vmatpush1.bf16.msra.mxu0 0
    %514 = vmatprep.subr.bf16.mxu0 0
    %515 = vmatpush1.bf16.msra.mxu0 0
    %516 = vmatprep.subr.bf16.mxu0 0
    %517 = vmatpush1.bf16.msra.mxu0 0
    %518 = vmatprep.mubr.bf16.mxu0 0
    %519 = vmatmul.mubr.bf16.gmra.mrb[0].mxu0 %v478
    %v520 = vpop.f32.mrb[0].mxu0
    %v521 = vadd.f32 %v465, %v520
    %v522 = vpop.f32.mrb[0].mxu0
    %v523 = vpop.f32.mrb[0].mxu0
    %v524 = vadd.f32 %v470, %v523
    %v525 = vpop.f32.mrb[0].mxu0
    %526 = vmatprep.mubr.bf16.mxu0 0
    %527 = vmatmul.mubr.bf16.gmra.mrb[0].mxu0 %v481
    %v528 = vpop.f32.mrb[0].mxu0
    %v529 = vadd.f32 %v475, %v528
    %v530 = vpop.f32.mrb[0].mxu0
    %v531 = vpop.f32.mrb[0].mxu0
    %v532 = vpop.f32.mrb[0].mxu0
    %533 = vdwg.mxu0
    %v534 = vtanh.pop %v521
    %v535 = vtanh.pop %v524
    %v536 = vtanh.pop %v529
    %s537 = scalar_lea.vmem %s1, 144
    %v538 = vld [vmem:[%s537] sm:$0xff]
    %v539 = vld [vmem:[%s537 + $0x8] sm:$0xff]
    %v540 = vld [vmem:[%s537 + $0x10] sm:$0xff]
    %v541 = vpack.c.bf16 %v539, %v538
    %v542 = vpack.c.bf16 %v540, %v540
    %v543 = vpack.c.bf16 %v535, %v534
    %v544 = vpack.c.bf16 %v536, %v536
    %s545 = scalar_lea.vmem %s2, 144
    %v546 = vld [vmem:[%s545] sm:$0xff]
    %v547 = vld [vmem:[%s545 + $0x8] sm:$0xff]
    %v548 = vld [vmem:[%s545 + $0x10] sm:$0xff]
    %550 = vset.pattern.permute.xlu0 0
    %551 = vperm.xlu0 %550, %v546
    %v552 = vpop.permute.xlu0 %551
    %555 = vset.pattern.permute.xlu0 0
    %556 = vperm.xlu0 %555, %v547
    %v557 = vpop.permute.xlu0 %556
    %560 = vset.pattern.permute.xlu0 0
    %561 = vperm.xlu0 %560, %v548
    %v562 = vpop.permute.xlu0 %561
    %v565 = vsel %vm127, %v541, 0
    %v568 = vsel %vm127, %v542, 0
    %v571 = vsel %vm134, %v544, 0
    %573 = vmatprep.subr.bf16.mxu0 0
    %574 = vmatpush1.bf16.msra.mxu0 %v543
    %575 = vmatprep.subr.bf16.mxu0 0
    %576 = vmatpush1.bf16.msra.mxu0 %v571
    %577 = vmatprep.subr.bf16.mxu0 0
    %578 = vmatpush1.bf16.msra.mxu0 0
    %579 = vmatprep.subr.bf16.mxu0 0
    %580 = vmatpush1.bf16.msra.mxu0 0
    %581 = vmatprep.subr.bf16.mxu0 0
    %582 = vmatpush1.bf16.msra.mxu0 0
    %583 = vmatprep.subr.bf16.mxu0 0
    %584 = vmatpush1.bf16.msra.mxu0 0
    %585 = vmatprep.subr.bf16.mxu0 0
    %586 = vmatpush1.bf16.msra.mxu0 0
    %587 = vmatprep.subr.bf16.mxu0 0
    %588 = vmatpush1.bf16.msra.mxu0 0
    %589 = vmatprep.subr.bf16.mxu0 0
    %590 = vmatpush1.bf16.msra.mxu0 0
    %591 = vmatprep.subr.bf16.mxu0 0
    %592 = vmatpush1.bf16.msra.mxu0 0
    %593 = vmatprep.subr.bf16.mxu0 0
    %594 = vmatpush1.bf16.msra.mxu0 0
    %595 = vmatprep.subr.bf16.mxu0 0
    %596 = vmatpush1.bf16.msra.mxu0 0
    %597 = vmatprep.subr.bf16.mxu0 0
    %598 = vmatpush1.bf16.msra.mxu0 0
    %599 = vmatprep.subr.bf16.mxu0 0
    %600 = vmatpush1.bf16.msra.mxu0 0
    %601 = vmatprep.subr.bf16.mxu0 0
    %602 = vmatpush1.bf16.msra.mxu0 0
    %603 = vmatprep.subr.bf16.mxu0 0
    %604 = vmatpush1.bf16.msra.mxu0 0
    %605 = vmatprep.mubr.bf16.mxu0 0
    %606 = vmatmul.mubr.bf16.gmra.mrb[0].mxu0 %v565
    %v607 = vpop.f32.mrb[0].mxu0
    %v608 = vadd.f32 %v552, %v607
    %v609 = vpop.f32.mrb[0].mxu0
    %v610 = vpop.f32.mrb[0].mxu0
    %v611 = vadd.f32 %v557, %v610
    %v612 = vpop.f32.mrb[0].mxu0
    %613 = vmatprep.mubr.bf16.mxu0 0
    %614 = vmatmul.mubr.bf16.gmra.mrb[0].mxu0 %v568
    %v615 = vpop.f32.mrb[0].mxu0
    %v616 = vadd.f32 %v562, %v615
    %v617 = vpop.f32.mrb[0].mxu0
    %v618 = vpop.f32.mrb[0].mxu0
    %v619 = vpop.f32.mrb[0].mxu0
    %620 = vdwg.mxu0
    %v621 = vtanh.pop %v608
    %v622 = vtanh.pop %v611
    %v623 = vtanh.pop %v616
    %s624 = scalar_lea.vmem %s1, 168
    %v625 = vld [vmem:[%s624] sm:$0xff]
    %v626 = vpack.c.bf16 %v625, %v625
    %v627 = vpack.c.bf16 %v622, %v621
    %v628 = vpack.c.bf16 %v623, %v623
    %s629 = scalar_lea.vmem %s2, 168
    %v630 = vld [vmem:[%s629] sm:$0xff]
    %632 = vset.pattern.permute.xlu0 0
    %633 = vperm.xlu0 %632, %v630
    %v634 = vpop.permute.xlu0 %633
    %v637 = vsel %vm127, %v626, 0
    %v640 = vsel %vm134, %v628, 0
    %642 = vmatprep.subr.bf16.mxu0 0
    %643 = vmatpush1.bf16.msra.mxu0 %v627
    %644 = vmatprep.subr.bf16.mxu0 0
    %645 = vmatpush1.bf16.msra.mxu0 %v640
    %646 = vmatprep.subr.bf16.mxu0 0
    %647 = vmatpush1.bf16.msra.mxu0 0
    %648 = vmatprep.subr.bf16.mxu0 0
    %649 = vmatpush1.bf16.msra.mxu0 0
    %650 = vmatprep.subr.bf16.mxu0 0
    %651 = vmatpush1.bf16.msra.mxu0 0
    %652 = vmatprep.subr.bf16.mxu0 0
    %653 = vmatpush1.bf16.msra.mxu0 0
    %654 = vmatprep.subr.bf16.mxu0 0
    %655 = vmatpush1.bf16.msra.mxu0 0
    %656 = vmatprep.subr.bf16.mxu0 0
    %657 = vmatpush1.bf16.msra.mxu0 0
    %658 = vmatprep.subr.bf16.mxu0 0
    %659 = vmatpush1.bf16.msra.mxu0 0
    %660 = vmatprep.subr.bf16.mxu0 0
    %661 = vmatpush1.bf16.msra.mxu0 0
    %662 = vmatprep.subr.bf16.mxu0 0
    %663 = vmatpush1.bf16.msra.mxu0 0
    %664 = vmatprep.subr.bf16.mxu0 0
    %665 = vmatpush1.bf16.msra.mxu0 0
    %666 = vmatprep.subr.bf16.mxu0 0
    %667 = vmatpush1.bf16.msra.mxu0 0
    %668 = vmatprep.subr.bf16.mxu0 0
    %669 = vmatpush1.bf16.msra.mxu0 0
    %670 = vmatprep.subr.bf16.mxu0 0
    %671 = vmatpush1.bf16.msra.mxu0 0
    %672 = vmatprep.subr.bf16.mxu0 0
    %673 = vmatpush1.bf16.msra.mxu0 0
    %674 = vmatprep.mubr.bf16.mxu0 0
    %675 = vmatmul.mubr.bf16.gmra.mrb[0].mxu0 %v637
    %v676 = vpop.f32.mrb[0].mxu0
    %v677 = vadd.f32 %v634, %v676
    %v678 = vpop.f32.mrb[0].mxu0
    %v679 = vpop.f32.mrb[0].mxu0
    %v680 = vpop.f32.mrb[0].mxu0
    %681 = vdwg.mxu0
    %682 = vst [vmem:[#allocation2] sm:$0x1] %v677
    // Predicated region
    $region14: #{dnn_forward_t.1} parent=1 // pred_check
      _
    $region15: #{dnn_forward_t.1} parent=1 // pred_check_branch
      %684 = sbr.rel (0) target = $region17
    $region16: #{dnn_forward_t.1} parent=1 // pred_region
      %s686 = ssub.s32 16, 16
      %687 = vsyncadd [#allocation3], %s686
      %s689 = sshll.u32 [#allocation2], 4
      %s690 = int_to_ptr.vmem [resolvable:$true] %s689
      %692 = dma.vmem_to_hbm [thread:$0]  %s690, 16, %s3, [#allocation3]
    $region17: #{dnn_forward_t.1} parent=1 // pred_fallthru
      _
    // Predicated region
    $region18: #{dnn_forward_t.1} parent=1 // pred_check
      _
    $region19: #{dnn_forward_t.1} parent=1 // pred_check_branch
      %694 = sbr.rel (0) target = $region21
    $region20: #{dnn_forward_t.1} parent=1 // pred_region
      %695 = dma.done [#allocation3], 16
    $region21: #{dnn_forward_t.1} parent=1 // pred_fallthru
      _
    %696 = vsyncpa [#allocation3], 1

</llo_original>
